<compile_context>
chip_gen: v7x
topology: tpu7x:2x2x1
jax: 0.10.0
libtpu: 0.0.40
codegen_flags: <defaults>
</compile_context>

<pallas_src>
import math

import jax
import jax.numpy as jnp
from jax.experimental import pallas as pl
from jax.experimental.pallas import tpu as pltpu


# ----------------------------- helpers ---------------------------------------

def _round_up(x: int, m: int) -> int:
    return (x + m - 1) // m * m


def fixed_embedding_table(c_in: int, d_model: int) -> jnp.ndarray:
    """Deterministic sinusoidal table, identical to FixedEmbedding.__init__."""
    position = jnp.arange(c_in, dtype=jnp.float32)[:, None]                  # (c_in, 1)
    div_term = jnp.exp(
        jnp.arange(0, d_model, 2, dtype=jnp.float32) * -(math.log(10000.0) / d_model)
    )                                                                         # (d_model/2,)
    w = jnp.zeros((c_in, d_model), dtype=jnp.float32)
    w = w.at[:, 0::2].set(jnp.sin(position * div_term))
    w = w.at[:, 1::2].set(jnp.cos(position * div_term))
    return w


def _choose_row_tile(n_rows: int, target: int) -> int:
    """Packed-row tile: a multiple of 8 (or the full extent), dividing the row
    count when possible (no row padding / no tail-slice copy), and preferring
    >= 2 grid steps so both v7x TensorCores engage."""
    target = max(8, (target // 8) * 8)
    if n_rows <= 8:
        return n_rows                                   # one full block
    limit = min(target, n_rows)
    divs = [d for d in range(8, limit + 1, 8) if n_rows % d == 0]
    if divs:
        small = [d for d in divs if d <= n_rows // 2]   # keep grid >= 2 if we can
        return small[-1] if small else divs[-1]
    if n_rows <= target:
        return n_rows                                   # awkward size: single full block
    return target                                       # big & awkward: pad rows


# ----------------------------- Pallas kernel ---------------------------------

def _temporal_embed_kernel(idx_ref, tbl_ref, out_ref):
    """Fused multi-hot embedding sum (all offsets pre-baked in the wrapper).

    idx_ref: (TILE, k*C)    int32  VMEM — vocab + pack-slot offsets already added
    tbl_ref: (2, K, Dout)   bf16   VMEM — hi/lo split of the fused f32 table
    out_ref: (TILE, Dout)          VMEM — k tokens packed per lane-dense row
    """
    idx = idx_ref[...]                                   # (TILE, k*C)
    tile, ncols = idx.shape
    k_dim = tbl_ref.shape[1]

    # Single hoisted iota (JAX does not CSE broadcast_in_dim).
    iota = jax.lax.broadcasted_iota(jnp.int32, (tile, k_dim), 1)

    # Vocab slots are disjoint, so the multi-hot is an OR of one-hots.
    hot = idx[:, 0:1] == iota
    for c in range(1, ncols):
        hot = hot | (idx[:, c:c + 1] == iota)
    multihot = hot.astype(jnp.bfloat16)                  # 0/1 exact in bf16

    # Two bf16 MXU matmuls (hi + lo) with f32 accumulation reproduce the f32
    # table sum to ~1e-4 abs while avoiding the 3x-pass emulated f32 matmul.
    acc = jnp.dot(multihot, tbl_ref[0], preferred_element_type=jnp.float32)
    acc = acc + jnp.dot(multihot, tbl_ref[1], preferred_element_type=jnp.float32)
    out_ref[...] = acc.astype(out_ref.dtype)


# ----------------------------- wrapper ----------------------------------------

class TemporalEmbeddingPallas:
    """coding_type='2' (FixedEmbedding) TemporalEmbedding with a Pallas forward."""

    HOUR_SIZE = 24
    DAY_SIZE = 32
    MONTH_SIZE = 13
    _VSLOT = 128          # per-pack-slot vocab stride (total vocab <= 75 always)
    _MAX_PACK = 8         # cap on tokens packed per output row

    def __init__(self, d_model: int, disting: str = "1h", out_dtype=jnp.float32):
        # out_dtype=jnp.bfloat16 halves output HBM writeback (the dominant HBM
        # term) if the consumer tolerates it; default f32 matches the module.
        self.d_model = d_model
        self.out_dtype = out_dtype

        self.hour_tbl = fixed_embedding_table(self.HOUR_SIZE, d_model)
        self.day_tbl = fixed_embedding_table(self.DAY_SIZE, d_model)
        self.month_tbl = fixed_embedding_table(self.MONTH_SIZE, d_model)
        feats = [(2, self.hour_tbl), (1, self.day_tbl), (0, self.month_tbl)]
        self.num_cols = 3
        self.minute_tbl = None
        if disting != "1h":
            minute_size = 2 if disting == "30m" else (4 if disting == "15m" else 6)
            self.minute_tbl = fixed_embedding_table(minute_size, d_model)
            feats.append((3, self.minute_tbl))
            self.num_cols = 4

        # Per-x-column vocab offsets into the fused table (hoisted to wrapper).
        col_off = [0] * self.num_cols
        rows, v_total = [], 0
        for col, t in feats:
            col_off[col] = v_total
            v_total += t.shape[0]
            rows.append(t)
        self.vocab_total = v_total
        self.col_offsets = jnp.asarray(col_off, jnp.int32)

        # Packing factor: k tokens per lane-dense (128-multiple) output row.
        if d_model % 128 == 0:
            k, d_out, col_padded = 1, d_model, False
        else:
            k = 128 // math.gcd(d_model, 128)
            if k <= self._MAX_PACK:
                d_out, col_padded = k * d_model, False   # contiguous reshape back is free
            else:
                # TODO(synk): awkward d_model (e.g. 200) falls back to column
                # padding + one post-kernel column-slice copy.
                k, d_out, col_padded = 1, _round_up(d_model, 128), True
        self.pack, self.d_out, self.col_padded = k, d_out, col_padded
        self.vslot = self._VSLOT
        self.k_dim = k * self.vslot                      # matmul K dimension

        # Fused table, bf16 hi/lo split, block-diagonal across pack slots.
        base = jnp.concatenate(rows, axis=0)             # (V_total, d_model) f32
        hi = base.astype(jnp.bfloat16)
        lo = (base - hi.astype(jnp.float32)).astype(jnp.bfloat16)
        fused = jnp.zeros((2, self.k_dim, d_out), jnp.bfloat16)
        for j in range(k):
            r0, c0 = j * self.vslot, j * d_model
            fused = fused.at[0, r0:r0 + v_total, c0:c0 + d_model].set(hi)
            fused = fused.at[1, r0:r0 + v_total, c0:c0 + d_model].set(lo)
        self.fused_tbl = fused

        # TODO(synk): out-of-range indices contribute a zero row here, whereas
        # nn.Embedding would raise; inputs are assumed in-range like the spec.

    def __call__(self, x: jnp.ndarray, tile_target: int = 1024) -> jnp.ndarray:
        B, L, C = x.shape
        assert C >= self.num_cols, "x must carry the module's time-feature columns"
        D, k, d_out, k_dim = self.d_model, self.pack, self.d_out, self.k_dim
        N = B * L

        # Hoist vocab offsets out of the kernel (one fused add on the indices).
        idx = x.reshape(N, C)[:, :self.num_cols].astype(jnp.int32)
        idx = idx + self.col_offsets[None, :]

        n_pk = -(-N // k)                                # packed rows
        out_itemsize = jnp.dtype(self.out_dtype).itemsize

        # Corrected VMEM accounting: lane-padded index block, double-buffered
        # table (constant index_map still gets 2 buffers), matmul temporaries.
        tbl_bytes = 2 * k_dim * d_out * 2                              # hi+lo, bf16
        in_row = max(k * self.num_cols, 128) * 4                       # (8,128)-padded
        out_row = d_out * out_itemsize
        scratch_row = k_dim * 4 + d_out * 4                            # multihot + f32 acc
        budget = 40 << 20                                              # safe on v7x (64 MiB/TC)
        max_rows = (budget - 2 * tbl_bytes) // (2 * (in_row + out_row) + scratch_row)
        max_rows = max(8, (max_rows // 8) * 8)
        tile = _choose_row_tile(n_pk, min(tile_target, max_rows))
        n_pk_pad = -(-n_pk // tile) * tile

        # Pad tokens (if any) point at the all-zero tail of a vocab slot.
        pad_tok = n_pk_pad * k - N
        if pad_tok:
            pad = jnp.full((pad_tok, self.num_cols), self.vocab_total, jnp.int32)
            idx = jnp.concatenate([idx, pad], axis=0)
        # Pack k tokens per row and bake in the per-slot vocab offset.
        idx = idx.reshape(n_pk_pad, k, self.num_cols)
        idx = idx + (jnp.arange(k, dtype=jnp.int32) * self.vslot)[None, :, None]
        idx = idx.reshape(n_pk_pad, k * self.num_cols)

        vmem_limit = int(2 * tile * (in_row + out_row) + tile * scratch_row
                         + 2 * tbl_bytes + (4 << 20))
        cost = pl.CostEstimate(
            flops=int(4 * n_pk_pad * k_dim * d_out),                  # hi + lo matmuls
            transcendentals=0,
            bytes_accessed=int(n_pk_pad * (k * self.num_cols * 4 + d_out * out_itemsize)
                               + tbl_bytes),
        )

        out = pl.pallas_call(
            _temporal_embed_kernel,
            out_shape=jax.ShapeDtypeStruct((n_pk_pad, d_out), self.out_dtype),
            grid_spec=pltpu.PrefetchScalarGridSpec(
                num_scalar_prefetch=0,
                grid=(n_pk_pad // tile,),
                in_specs=[
                    pl.BlockSpec((tile, k * self.num_cols), lambda i: (i, 0)),  # indices
                    pl.BlockSpec((2, k_dim, d_out), lambda i: (0, 0, 0)),       # fused table
                ],
                out_specs=pl.BlockSpec((tile, d_out), lambda i: (i, 0)),
            ),
            compiler_params=pltpu.CompilerParams(
                dimension_semantics=("parallel",),        # v7x: 2 TCs split the row loop
                vmem_limit_bytes=vmem_limit,
            ),
            cost_estimate=cost,
        )(idx, self.fused_tbl)

        if self.col_padded:
            out = out[:, :D]                              # fallback path only
        # Packed rows -> tokens: contiguous reshape (copy-free); the [:N] slice
        # is an identity when no padding was needed.
        return out.reshape(n_pk_pad * k, D)[:N].reshape(B, L, D)


# ----------------------------- demo / check -----------------------------------

if __name__ == "__main__":
    B, L, d_model = 2, 8, 32
    key = jax.random.PRNGKey(0)
    km, kd, kh, kmin = jax.random.split(key, 4)
    month = jax.random.randint(km, (B, L, 1), 0, TemporalEmbeddingPallas.MONTH_SIZE)
    day = jax.random.randint(kd, (B, L, 1), 0, TemporalEmbeddingPallas.DAY_SIZE)
    hour = jax.random.randint(kh, (B, L, 1), 0, TemporalEmbeddingPallas.HOUR_SIZE)
    minute = jax.random.randint(kmin, (B, L, 1), 0, 4)

    # --- '1h' path, f32 output (parity with the PyTorch module) ---
    x3 = jnp.concatenate([month, day, hour], axis=-1)                 # (B, L, 3)
    mod = TemporalEmbeddingPallas(d_model, disting="1h")
    out = jax.block_until_ready(mod(x3))
    ref = (jnp.take(mod.hour_tbl, x3[:, :, 2], axis=0)
           + jnp.take(mod.day_tbl, x3[:, :, 1], axis=0)
           + jnp.take(mod.month_tbl, x3[:, :, 0], axis=0))
    assert out.shape == (B, L, d_model)
    assert out.dtype == jnp.float32
    assert jnp.allclose(out, ref, atol=2e-4), "f32 path mismatch vs reference"

    # --- '15m' path (minute column), bf16 output (reduced-writeback option) ---
    x4 = jnp.concatenate([month, day, hour, minute], axis=-1)         # (B, L, 4)
    mod16 = TemporalEmbeddingPallas(d_model, disting="15m", out_dtype=jnp.bfloat16)
    out16 = jax.block_until_ready(mod16(x4))
    ref16 = (jnp.take(mod16.hour_tbl, x4[:, :, 2], axis=0)
             + jnp.take(mod16.day_tbl, x4[:, :, 1], axis=0)
             + jnp.take(mod16.month_tbl, x4[:, :, 0], axis=0)
             + jnp.take(mod16.minute_tbl, x4[:, :, 3], axis=0))
    assert out16.shape == (B, L, d_model)
    assert jnp.allclose(out16.astype(jnp.float32), ref16, atol=3e-2), "bf16 path mismatch"

    print("KERNEL_OK")
</pallas_src>

<mosaic_0001>
module attributes {stable_mosaic.version = 11 : i64} {
  func.func @_temporal_embed_kernel(%arg0: i32, %arg1: memref<4x12xi32, #tpu.memory_space<vmem>>, %arg2: memref<2x512x128xbf16, #tpu.memory_space<vmem>>, %arg3: memref<4x128xf32, #tpu.memory_space<vmem>>) attributes {dimension_semantics = [#tpu.dimension_semantics<parallel>], iteration_bounds = array<i64: 1>, scalar_prefetch = 0 : i64, scratch_operands = 0 : i64, tpu.core_type = #tpu.core_type<tc>, window_params = [{transform_indices = @transform_0, window_bounds = array<i64: 4, 12>}, {pipeline_mode = #tpu.pipeline_mode<synchronous>, transform_indices = @transform_1, window_bounds = array<i64: 2, 512, 128>}, {transform_indices = @transform_2, window_bounds = array<i64: 4, 128>}]} {
    %c0 = arith.constant 0 : index
    %c0_0 = arith.constant 0 : index
    %0 = vector.load %arg1[%c0, %c0_0] : memref<4x12xi32, #tpu.memory_space<vmem>>, vector<4x12xi32>
    %1 = tpu.iota {dimensions = array<i32: 1>} : vector<4x512xi32>
    %2 = vector.extract_strided_slice %0 {offsets = [0, 0], sizes = [4, 1], strides = [1, 1]} : vector<4x12xi32> to vector<4x1xi32>
    %3 = vector.broadcast %2 : vector<4x1xi32> to vector<4x512xi32>
    %4 = arith.cmpi eq, %3, %1 : vector<4x512xi32>
    %5 = vector.extract_strided_slice %0 {offsets = [0, 1], sizes = [4, 1], strides = [1, 1]} : vector<4x12xi32> to vector<4x1xi32>
    %6 = vector.broadcast %5 : vector<4x1xi32> to vector<4x512xi32>
    %7 = arith.cmpi eq, %6, %1 : vector<4x512xi32>
    %8 = arith.ori %4, %7 : vector<4x512xi1>
    %9 = vector.extract_strided_slice %0 {offsets = [0, 2], sizes = [4, 1], strides = [1, 1]} : vector<4x12xi32> to vector<4x1xi32>
    %10 = vector.broadcast %9 : vector<4x1xi32> to vector<4x512xi32>
    %11 = arith.cmpi eq, %10, %1 : vector<4x512xi32>
    %12 = arith.ori %8, %11 : vector<4x512xi1>
    %13 = vector.extract_strided_slice %0 {offsets = [0, 3], sizes = [4, 1], strides = [1, 1]} : vector<4x12xi32> to vector<4x1xi32>
    %14 = vector.broadcast %13 : vector<4x1xi32> to vector<4x512xi32>
    %15 = arith.cmpi eq, %14, %1 : vector<4x512xi32>
    %16 = arith.ori %12, %15 : vector<4x512xi1>
    %17 = vector.extract_strided_slice %0 {offsets = [0, 4], sizes = [4, 1], strides = [1, 1]} : vector<4x12xi32> to vector<4x1xi32>
    %18 = vector.broadcast %17 : vector<4x1xi32> to vector<4x512xi32>
    %19 = arith.cmpi eq, %18, %1 : vector<4x512xi32>
    %20 = arith.ori %16, %19 : vector<4x512xi1>
    %21 = vector.extract_strided_slice %0 {offsets = [0, 5], sizes = [4, 1], strides = [1, 1]} : vector<4x12xi32> to vector<4x1xi32>
    %22 = vector.broadcast %21 : vector<4x1xi32> to vector<4x512xi32>
    %23 = arith.cmpi eq, %22, %1 : vector<4x512xi32>
    %24 = arith.ori %20, %23 : vector<4x512xi1>
    %25 = vector.extract_strided_slice %0 {offsets = [0, 6], sizes = [4, 1], strides = [1, 1]} : vector<4x12xi32> to vector<4x1xi32>
    %26 = vector.broadcast %25 : vector<4x1xi32> to vector<4x512xi32>
    %27 = arith.cmpi eq, %26, %1 : vector<4x512xi32>
    %28 = arith.ori %24, %27 : vector<4x512xi1>
    %29 = vector.extract_strided_slice %0 {offsets = [0, 7], sizes = [4, 1], strides = [1, 1]} : vector<4x12xi32> to vector<4x1xi32>
    %30 = vector.broadcast %29 : vector<4x1xi32> to vector<4x512xi32>
    %31 = arith.cmpi eq, %30, %1 : vector<4x512xi32>
    %32 = arith.ori %28, %31 : vector<4x512xi1>
    %33 = vector.extract_strided_slice %0 {offsets = [0, 8], sizes = [4, 1], strides = [1, 1]} : vector<4x12xi32> to vector<4x1xi32>
    %34 = vector.broadcast %33 : vector<4x1xi32> to vector<4x512xi32>
    %35 = arith.cmpi eq, %34, %1 : vector<4x512xi32>
    %36 = arith.ori %32, %35 : vector<4x512xi1>
    %37 = vector.extract_strided_slice %0 {offsets = [0, 9], sizes = [4, 1], strides = [1, 1]} : vector<4x12xi32> to vector<4x1xi32>
    %38 = vector.broadcast %37 : vector<4x1xi32> to vector<4x512xi32>
    %39 = arith.cmpi eq, %38, %1 : vector<4x512xi32>
    %40 = arith.ori %36, %39 : vector<4x512xi1>
    %41 = vector.extract_strided_slice %0 {offsets = [0, 10], sizes = [4, 1], strides = [1, 1]} : vector<4x12xi32> to vector<4x1xi32>
    %42 = vector.broadcast %41 : vector<4x1xi32> to vector<4x512xi32>
    %43 = arith.cmpi eq, %42, %1 : vector<4x512xi32>
    %44 = arith.ori %40, %43 : vector<4x512xi1>
    %45 = vector.extract_strided_slice %0 {offsets = [0, 11], sizes = [4, 1], strides = [1, 1]} : vector<4x12xi32> to vector<4x1xi32>
    %46 = vector.broadcast %45 : vector<4x1xi32> to vector<4x512xi32>
    %47 = arith.cmpi eq, %46, %1 : vector<4x512xi32>
    %48 = arith.ori %44, %47 : vector<4x512xi1>
    %49 = arith.extui %48 : vector<4x512xi1> to vector<4x512xi32>
    %50 = arith.sitofp %49 : vector<4x512xi32> to vector<4x512xf32>
    %51 = arith.truncf %50 : vector<4x512xf32> to vector<4x512xbf16>
    %c0_1 = arith.constant 0 : index
    %c0_2 = arith.constant 0 : index
    %c0_3 = arith.constant 0 : index
    %52 = vector.load %arg2[%c0_1, %c0_2, %c0_3] : memref<2x512x128xbf16, #tpu.memory_space<vmem>>, vector<1x512x128xbf16>
    %53 = vector.shape_cast %52 : vector<1x512x128xbf16> to vector<512x128xbf16>
    %cst = arith.constant dense<0.000000e+00> : vector<4x128xf32>
    %54 = tpu.matmul %51, %53, %cst {dimension_numbers = #tpu.dot_dimension_numbers<[1], [0], [0], [1], [0, 0, 1, 1], [], []>} : vector<4x512xbf16>, vector<512x128xbf16>, vector<4x128xf32> -> vector<4x128xf32>
    %c1 = arith.constant 1 : index
    %c0_4 = arith.constant 0 : index
    %c0_5 = arith.constant 0 : index
    %55 = vector.load %arg2[%c1, %c0_4, %c0_5] : memref<2x512x128xbf16, #tpu.memory_space<vmem>>, vector<1x512x128xbf16>
    %56 = vector.shape_cast %55 : vector<1x512x128xbf16> to vector<512x128xbf16>
    %cst_6 = arith.constant dense<0.000000e+00> : vector<4x128xf32>
    %57 = tpu.matmul %51, %56, %cst_6 {dimension_numbers = #tpu.dot_dimension_numbers<[1], [0], [0], [1], [0, 0, 1, 1], [], []>} : vector<4x512xbf16>, vector<512x128xbf16>, vector<4x128xf32> -> vector<4x128xf32>
    %58 = arith.addf %54, %57 : vector<4x128xf32>
    %c0_7 = arith.constant 0 : index
    %c0_8 = arith.constant 0 : index
    %59 = vector.load %arg3[%c0_7, %c0_8] : memref<4x128xf32, #tpu.memory_space<vmem>>, vector<4x128xf32>
    tpu.vector_store %arg3[%c0_7, %c0_8], %58 {strides = array<i32>} : memref<4x128xf32, #tpu.memory_space<vmem>>, vector<4x128xf32>,
    return
  }
  func.func @transform_0(%arg0: i32) -> (i32, i32) {
    %c0_i32 = arith.constant 0 : i32
    %c0_i32_0 = arith.constant 0 : i32
    return %arg0, %c0_i32 : i32, i32
  }
  func.func @transform_1(%arg0: i32) -> (i32, i32, i32) {
    %c0_i32 = arith.constant 0 : i32
    %c0_i32_0 = arith.constant 0 : i32
    %c0_i32_1 = arith.constant 0 : i32
    %c0_i32_2 = arith.constant 0 : i32
    return %c0_i32, %c0_i32_0, %c0_i32_1 : i32, i32, i32
  }
  func.func @transform_2(%arg0: i32) -> (i32, i32) {
    %c0_i32 = arith.constant 0 : i32
    %c0_i32_0 = arith.constant 0 : i32
    return %arg0, %c0_i32 : i32, i32
  }
}

</mosaic_0001>

<llo_original>
// kernel: tpu_custom_call.1
$region0: #{tpu_custom_call.1}
  #allocation0 [shape = 'u32[]', space=smem, size = 0x4, offset = 0x4, fixed_abs, tag = 'smem constant byte address 0x4 - core index']
  #allocation1 [shape = 'u32[144,128]{1,0:T(1,128)}', space=vmem, size = 0x12000, scoped, tag = 'internal scratch']
  %s0 = inlined_call_operand.hbm [shape: s32[4,12], index: 0, kind: input, shape index: {}]
  %s1 = inlined_call_operand.hbm [shape: bf16[2,512,128], index: 1, kind: input, shape index: {}]
  %s2 = inlined_call_operand.hbm [shape: f32[4,128], index: 2, kind: output, shape index: {}]
  %s3 = sld [smem:[#allocation0]]
  $region26: #{tpu_custom_call.1} parent=0
    _
  %s5 = ssub.s32 1, %s3
  %s6 = scalar_select 0, %s5, %s3
  $region1: #{tpu_custom_call.1} parent=0
    #allocation2 [shape = 'u8[2048]{0}', space=vmem, size = 0x800, scoped, tag = 'input window, operand 0, single buffered']
    #allocation3 [shape = 's32[1]{0}', space=sflag, size = 0x4, scoped, tag = 'scoped memory for tpu_custom_call.1']
    #allocation4 [shape = 's32[1]{0}', space=sflag, size = 0x4, scoped, tag = 'scoped memory for tpu_custom_call.1']
    #allocation5 [shape = 'u8[262144]{0}', space=vmem, size = 0x40000, scoped, tag = 'input window, operand 1, single buffered']
    #allocation6 [shape = 's32[1]{0}', space=sflag, size = 0x4, scoped, tag = 'scoped memory for tpu_custom_call.1']
    #allocation7 [shape = 'u8[2048]{0}', space=vmem, size = 0x800, scoped, tag = 'output window, operand 0, single buffered']
    %7 = vsyncpa [#allocation3], 0
    %8 = vsyncpa [#allocation6], 0
    %9 = vsyncpa [#allocation4], 0
    // Predicated region
    $region2: #{tpu_custom_call.1} parent=1 // pred_check
      _
    $region3: #{tpu_custom_call.1} parent=1 // pred_check_branch
      %11 = sbr.rel (0) target = $region5
    $region4: #{tpu_custom_call.1} parent=1 // pred_region
      %s13 = ssub.s32 64, 64
      %14 = vsyncadd [#allocation3], %s13
      %s16 = sshll.u32 [#allocation2], 4
      %s17 = int_to_ptr.vmem [resolvable:$true] %s16
      %19 = dma.hbm_to_vmem [thread:$0]  %s0, 64, %s17, [#allocation3]
    $region5: #{tpu_custom_call.1} parent=1 // pred_fallthru
      _
    // Predicated region
    $region6: #{tpu_custom_call.1} parent=1 // pred_check
      _
    $region7: #{tpu_custom_call.1} parent=1 // pred_check_branch
      %21 = sbr.rel (0) target = $region9
    $region8: #{tpu_custom_call.1} parent=1 // pred_region
      %s23 = ssub.s32 8192, 8192
      %24 = vsyncadd [#allocation6], %s23
      %s25 = sshll.u32 [#allocation5], 4
      %s26 = int_to_ptr.vmem [resolvable:$true] %s25
      %31 = dma.hbm_to_vmem [thread:$0]  %s1, 8192, %s26, [#allocation6], 64, 64, 4
    $region9: #{tpu_custom_call.1} parent=1 // pred_fallthru
      _
    // Predicated region
    $region10: #{tpu_custom_call.1} parent=1 // pred_check
      _
    $region11: #{tpu_custom_call.1} parent=1 // pred_check_branch
      %33 = sbr.rel (0) target = $region13
    $region12: #{tpu_custom_call.1} parent=1 // pred_region
      %34 = dma.done [#allocation3], 64
    $region13: #{tpu_custom_call.1} parent=1 // pred_fallthru
      _
    // Predicated region
    $region14: #{tpu_custom_call.1} parent=1 // pred_check
      _
    $region15: #{tpu_custom_call.1} parent=1 // pred_check_branch
      %36 = sbr.rel (0) target = $region17
    $region16: #{tpu_custom_call.1} parent=1 // pred_region
      %37 = dma.done [#allocation6], 8192
    $region17: #{tpu_custom_call.1} parent=1 // pred_fallthru
      _
    %v39 = vld [vmem:[#allocation2] sm:$0xf]
    %v40 = vlaneseq
    %v41 = vand.u32 %v40, 127
    %v42 = vadd.s32 %v41, 128
    %v43 = vadd.s32 %v41, 256
    %v44 = vadd.s32 %v41, 384
    %45 = vset.pattern.permute.xlu0 0
    %46 = vperm.xlu0 %45, %v39
    %v47 = vpop.permute.xlu0 %46
    %vm48 = vcmp.eq.s32.totalorder %v47, %v41
    %vm49 = vcmp.eq.s32.totalorder %v47, %v42
    %vm50 = vcmp.eq.s32.totalorder %v47, %v43
    %vm51 = vcmp.eq.s32.totalorder %v47, %v44
    %52 = vset.pattern.permute.xlu0 1
    %53 = vperm.xlu0 %52, %v39
    %v54 = vpop.permute.xlu0 %53
    %vm55 = vcmp.eq.s32.totalorder %v54, %v41
    %vm56 = vcmp.eq.s32.totalorder %v54, %v42
    %vm57 = vcmp.eq.s32.totalorder %v54, %v43
    %vm58 = vcmp.eq.s32.totalorder %v54, %v44
    %vm59 = vmor %vm48, %vm55
    %vm60 = vmor %vm49, %vm56
    %vm61 = vmor %vm50, %vm57
    %vm62 = vmor %vm51, %vm58
    %63 = vset.pattern.permute.xlu0 2
    %64 = vperm.xlu0 %63, %v39
    %v65 = vpop.permute.xlu0 %64
    %vm66 = vcmp.eq.s32.totalorder %v65, %v41
    %vm67 = vcmp.eq.s32.totalorder %v65, %v42
    %vm68 = vcmp.eq.s32.totalorder %v65, %v43
    %vm69 = vcmp.eq.s32.totalorder %v65, %v44
    %vm70 = vmor %vm59, %vm66
    %vm71 = vmor %vm60, %vm67
    %vm72 = vmor %vm61, %vm68
    %vm73 = vmor %vm62, %vm69
    %74 = vset.pattern.permute.xlu0 3
    %75 = vperm.xlu0 %74, %v39
    %v76 = vpop.permute.xlu0 %75
    %vm77 = vcmp.eq.s32.totalorder %v76, %v41
    %vm78 = vcmp.eq.s32.totalorder %v76, %v42
    %vm79 = vcmp.eq.s32.totalorder %v76, %v43
    %vm80 = vcmp.eq.s32.totalorder %v76, %v44
    %vm81 = vmor %vm70, %vm77
    %vm82 = vmor %vm71, %vm78
    %vm83 = vmor %vm72, %vm79
    %vm84 = vmor %vm73, %vm80
    %85 = vset.pattern.permute.xlu0 4
    %86 = vperm.xlu0 %85, %v39
    %v87 = vpop.permute.xlu0 %86
    %vm88 = vcmp.eq.s32.totalorder %v87, %v41
    %vm89 = vcmp.eq.s32.totalorder %v87, %v42
    %vm90 = vcmp.eq.s32.totalorder %v87, %v43
    %vm91 = vcmp.eq.s32.totalorder %v87, %v44
    %vm92 = vmor %vm81, %vm88
    %vm93 = vmor %vm82, %vm89
    %vm94 = vmor %vm83, %vm90
    %vm95 = vmor %vm84, %vm91
    %96 = vset.pattern.permute.xlu0 5
    %97 = vperm.xlu0 %96, %v39
    %v98 = vpop.permute.xlu0 %97
    %vm99 = vcmp.eq.s32.totalorder %v98, %v41
    %vm100 = vcmp.eq.s32.totalorder %v98, %v42
    %vm101 = vcmp.eq.s32.totalorder %v98, %v43
    %vm102 = vcmp.eq.s32.totalorder %v98, %v44
    %vm103 = vmor %vm92, %vm99
    %vm104 = vmor %vm93, %vm100
    %vm105 = vmor %vm94, %vm101
    %vm106 = vmor %vm95, %vm102
    %107 = vset.pattern.permute.xlu0 6
    %108 = vperm.xlu0 %107, %v39
    %v109 = vpop.permute.xlu0 %108
    %vm110 = vcmp.eq.s32.totalorder %v109, %v41
    %vm111 = vcmp.eq.s32.totalorder %v109, %v42
    %vm112 = vcmp.eq.s32.totalorder %v109, %v43
    %vm113 = vcmp.eq.s32.totalorder %v109, %v44
    %vm114 = vmor %vm103, %vm110
    %vm115 = vmor %vm104, %vm111
    %vm116 = vmor %vm105, %vm112
    %vm117 = vmor %vm106, %vm113
    %118 = vset.pattern.permute.xlu0 7
    %119 = vperm.xlu0 %118, %v39
    %v120 = vpop.permute.xlu0 %119
    %vm121 = vcmp.eq.s32.totalorder %v120, %v41
    %vm122 = vcmp.eq.s32.totalorder %v120, %v42
    %vm123 = vcmp.eq.s32.totalorder %v120, %v43
    %vm124 = vcmp.eq.s32.totalorder %v120, %v44
    %vm125 = vmor %vm114, %vm121
    %vm126 = vmor %vm115, %vm122
    %vm127 = vmor %vm116, %vm123
    %vm128 = vmor %vm117, %vm124
    %129 = vset.pattern.permute.xlu0 8
    %130 = vperm.xlu0 %129, %v39
    %v131 = vpop.permute.xlu0 %130
    %vm132 = vcmp.eq.s32.totalorder %v131, %v41
    %vm133 = vcmp.eq.s32.totalorder %v131, %v42
    %vm134 = vcmp.eq.s32.totalorder %v131, %v43
    %vm135 = vcmp.eq.s32.totalorder %v131, %v44
    %vm136 = vmor %vm125, %vm132
    %vm137 = vmor %vm126, %vm133
    %vm138 = vmor %vm127, %vm134
    %vm139 = vmor %vm128, %vm135
    %140 = vset.pattern.permute.xlu0 9
    %141 = vperm.xlu0 %140, %v39
    %v142 = vpop.permute.xlu0 %141
    %vm143 = vcmp.eq.s32.totalorder %v142, %v41
    %vm144 = vcmp.eq.s32.totalorder %v142, %v42
    %vm145 = vcmp.eq.s32.totalorder %v142, %v43
    %vm146 = vcmp.eq.s32.totalorder %v142, %v44
    %vm147 = vmor %vm136, %vm143
    %vm148 = vmor %vm137, %vm144
    %vm149 = vmor %vm138, %vm145
    %vm150 = vmor %vm139, %vm146
    %151 = vset.pattern.permute.xlu0 10
    %152 = vperm.xlu0 %151, %v39
    %v153 = vpop.permute.xlu0 %152
    %vm154 = vcmp.eq.s32.totalorder %v153, %v41
    %vm155 = vcmp.eq.s32.totalorder %v153, %v42
    %vm156 = vcmp.eq.s32.totalorder %v153, %v43
    %vm157 = vcmp.eq.s32.totalorder %v153, %v44
    %vm158 = vmor %vm147, %vm154
    %vm159 = vmor %vm148, %vm155
    %vm160 = vmor %vm149, %vm156
    %vm161 = vmor %vm150, %vm157
    %162 = vset.pattern.permute.xlu0 11
    %163 = vperm.xlu0 %162, %v39
    %v164 = vpop.permute.xlu0 %163
    %vm165 = vcmp.eq.s32.totalorder %v164, %v41
    %vm166 = vcmp.eq.s32.totalorder %v164, %v42
    %vm167 = vcmp.eq.s32.totalorder %v164, %v43
    %vm168 = vcmp.eq.s32.totalorder %v164, %v44
    %vm169 = vmor %vm158, %vm165
    %vm170 = vmor %vm159, %vm166
    %vm171 = vmor %vm160, %vm167
    %vm172 = vmor %vm161, %vm168
    %v173 = vsel %vm169, 1, 0
    %v174 = vsel %vm170, 1, 0
    %v175 = vsel %vm171, 1, 0
    %v176 = vsel %vm172, 1, 0
    %v177 = vcvt.s32.f32 %v173
    %v178 = vcvt.s32.f32 %v174
    %v179 = vcvt.s32.f32 %v175
    %v180 = vcvt.s32.f32 %v176
    %v181 = vpack.c.bf16 %v177, %v177
    %v182 = vpack.c.bf16 %v178, %v178
    %v183 = vpack.c.bf16 %v179, %v179
    %v184 = vpack.c.bf16 %v180, %v180
    %v185 = vld [vmem:[#allocation5] sm:$0xf]
    %v186 = vld [vmem:[#allocation5 + $0x4] sm:$0xf]
    %v187 = vld [vmem:[#allocation5 + $0x8] sm:$0xf]
    %v188 = vld [vmem:[#allocation5 + $0xc] sm:$0xf]
    %v189 = vld [vmem:[#allocation5 + $0x10] sm:$0xf]
    %v190 = vld [vmem:[#allocation5 + $0x14] sm:$0xf]
    %v191 = vld [vmem:[#allocation5 + $0x18] sm:$0xf]
    %v192 = vld [vmem:[#allocation5 + $0x1c] sm:$0xf]
    %v193 = vld [vmem:[#allocation5 + $0x20] sm:$0xf]
    %v194 = vld [vmem:[#allocation5 + $0x24] sm:$0xf]
    %v195 = vld [vmem:[#allocation5 + $0x28] sm:$0xf]
    %v196 = vld [vmem:[#allocation5 + $0x2c] sm:$0xf]
    %v197 = vld [vmem:[#allocation5 + $0x30] sm:$0xf]
    %v198 = vld [vmem:[#allocation5 + $0x34] sm:$0xf]
    %v199 = vld [vmem:[#allocation5 + $0x38] sm:$0xf]
    %v200 = vld [vmem:[#allocation5 + $0x3c] sm:$0xf]
    %v201 = vld [vmem:[#allocation5 + $0x40] sm:$0xf]
    %v202 = vld [vmem:[#allocation5 + $0x44] sm:$0xf]
    %v203 = vld [vmem:[#allocation5 + $0x48] sm:$0xf]
    %v204 = vld [vmem:[#allocation5 + $0x4c] sm:$0xf]
    %v205 = vld [vmem:[#allocation5 + $0x50] sm:$0xf]
    %v206 = vld [vmem:[#allocation5 + $0x54] sm:$0xf]
    %v207 = vld [vmem:[#allocation5 + $0x58] sm:$0xf]
    %v208 = vld [vmem:[#allocation5 + $0x5c] sm:$0xf]
    %v209 = vld [vmem:[#allocation5 + $0x60] sm:$0xf]
    %v210 = vld [vmem:[#allocation5 + $0x64] sm:$0xf]
    %v211 = vld [vmem:[#allocation5 + $0x68] sm:$0xf]
    %v212 = vld [vmem:[#allocation5 + $0x6c] sm:$0xf]
    %v213 = vld [vmem:[#allocation5 + $0x70] sm:$0xf]
    %v214 = vld [vmem:[#allocation5 + $0x74] sm:$0xf]
    %v215 = vld [vmem:[#allocation5 + $0x78] sm:$0xf]
    %v216 = vld [vmem:[#allocation5 + $0x7c] sm:$0xf]
    %v217 = vld [vmem:[#allocation5 + $0x80] sm:$0xf]
    %v218 = vld [vmem:[#allocation5 + $0x84] sm:$0xf]
    %v219 = vld [vmem:[#allocation5 + $0x88] sm:$0xf]
    %v220 = vld [vmem:[#allocation5 + $0x8c] sm:$0xf]
    %v221 = vld [vmem:[#allocation5 + $0x90] sm:$0xf]
    %v222 = vld [vmem:[#allocation5 + $0x94] sm:$0xf]
    %v223 = vld [vmem:[#allocation5 + $0x98] sm:$0xf]
    %v224 = vld [vmem:[#allocation5 + $0x9c] sm:$0xf]
    %v225 = vld [vmem:[#allocation5 + $0xa0] sm:$0xf]
    %v226 = vld [vmem:[#allocation5 + $0xa4] sm:$0xf]
    %v227 = vld [vmem:[#allocation5 + $0xa8] sm:$0xf]
    %v228 = vld [vmem:[#allocation5 + $0xac] sm:$0xf]
    %v229 = vld [vmem:[#allocation5 + $0xb0] sm:$0xf]
    %v230 = vld [vmem:[#allocation5 + $0xb4] sm:$0xf]
    %v231 = vld [vmem:[#allocation5 + $0xb8] sm:$0xf]
    %v232 = vld [vmem:[#allocation5 + $0xbc] sm:$0xf]
    %v233 = vld [vmem:[#allocation5 + $0xc0] sm:$0xf]
    %v234 = vld [vmem:[#allocation5 + $0xc4] sm:$0xf]
    %v235 = vld [vmem:[#allocation5 + $0xc8] sm:$0xf]
    %v236 = vld [vmem:[#allocation5 + $0xcc] sm:$0xf]
    %v237 = vld [vmem:[#allocation5 + $0xd0] sm:$0xf]
    %v238 = vld [vmem:[#allocation5 + $0xd4] sm:$0xf]
    %v239 = vld [vmem:[#allocation5 + $0xd8] sm:$0xf]
    %v240 = vld [vmem:[#allocation5 + $0xdc] sm:$0xf]
    %v241 = vld [vmem:[#allocation5 + $0xe0] sm:$0xf]
    %v242 = vld [vmem:[#allocation5 + $0xe4] sm:$0xf]
    %v243 = vld [vmem:[#allocation5 + $0xe8] sm:$0xf]
    %v244 = vld [vmem:[#allocation5 + $0xec] sm:$0xf]
    %v245 = vld [vmem:[#allocation5 + $0xf0] sm:$0xf]
    %v246 = vld [vmem:[#allocation5 + $0xf4] sm:$0xf]
    %v247 = vld [vmem:[#allocation5 + $0xf8] sm:$0xf]
    %v248 = vld [vmem:[#allocation5 + $0xfc] sm:$0xf]
    %s249 = scalar_lea.vmem [#allocation5], 256
    %v250 = vld [vmem:[%s249] sm:$0xf]
    %v251 = vld [vmem:[%s249 + $0x4] sm:$0xf]
    %v252 = vld [vmem:[%s249 + $0x8] sm:$0xf]
    %v253 = vld [vmem:[%s249 + $0xc] sm:$0xf]
    %v254 = vld [vmem:[%s249 + $0x10] sm:$0xf]
    %v255 = vld [vmem:[%s249 + $0x14] sm:$0xf]
    %v256 = vld [vmem:[%s249 + $0x18] sm:$0xf]
    %v257 = vld [vmem:[%s249 + $0x1c] sm:$0xf]
    %v258 = vld [vmem:[%s249 + $0x20] sm:$0xf]
    %v259 = vld [vmem:[%s249 + $0x24] sm:$0xf]
    %v260 = vld [vmem:[%s249 + $0x28] sm:$0xf]
    %v261 = vld [vmem:[%s249 + $0x2c] sm:$0xf]
    %v262 = vld [vmem:[%s249 + $0x30] sm:$0xf]
    %v263 = vld [vmem:[%s249 + $0x34] sm:$0xf]
    %v264 = vld [vmem:[%s249 + $0x38] sm:$0xf]
    %v265 = vld [vmem:[%s249 + $0x3c] sm:$0xf]
    %v266 = vld [vmem:[%s249 + $0x40] sm:$0xf]
    %v267 = vld [vmem:[%s249 + $0x44] sm:$0xf]
    %v268 = vld [vmem:[%s249 + $0x48] sm:$0xf]
    %v269 = vld [vmem:[%s249 + $0x4c] sm:$0xf]
    %v270 = vld [vmem:[%s249 + $0x50] sm:$0xf]
    %v271 = vld [vmem:[%s249 + $0x54] sm:$0xf]
    %v272 = vld [vmem:[%s249 + $0x58] sm:$0xf]
    %v273 = vld [vmem:[%s249 + $0x5c] sm:$0xf]
    %v274 = vld [vmem:[%s249 + $0x60] sm:$0xf]
    %v275 = vld [vmem:[%s249 + $0x64] sm:$0xf]
    %v276 = vld [vmem:[%s249 + $0x68] sm:$0xf]
    %v277 = vld [vmem:[%s249 + $0x6c] sm:$0xf]
    %v278 = vld [vmem:[%s249 + $0x70] sm:$0xf]
    %v279 = vld [vmem:[%s249 + $0x74] sm:$0xf]
    %v280 = vld [vmem:[%s249 + $0x78] sm:$0xf]
    %v281 = vld [vmem:[%s249 + $0x7c] sm:$0xf]
    %v282 = vld [vmem:[%s249 + $0x80] sm:$0xf]
    %v283 = vld [vmem:[%s249 + $0x84] sm:$0xf]
    %v284 = vld [vmem:[%s249 + $0x88] sm:$0xf]
    %v285 = vld [vmem:[%s249 + $0x8c] sm:$0xf]
    %v286 = vld [vmem:[%s249 + $0x90] sm:$0xf]
    %v287 = vld [vmem:[%s249 + $0x94] sm:$0xf]
    %v288 = vld [vmem:[%s249 + $0x98] sm:$0xf]
    %v289 = vld [vmem:[%s249 + $0x9c] sm:$0xf]
    %v290 = vld [vmem:[%s249 + $0xa0] sm:$0xf]
    %v291 = vld [vmem:[%s249 + $0xa4] sm:$0xf]
    %v292 = vld [vmem:[%s249 + $0xa8] sm:$0xf]
    %v293 = vld [vmem:[%s249 + $0xac] sm:$0xf]
    %v294 = vld [vmem:[%s249 + $0xb0] sm:$0xf]
    %v295 = vld [vmem:[%s249 + $0xb4] sm:$0xf]
    %v296 = vld [vmem:[%s249 + $0xb8] sm:$0xf]
    %v297 = vld [vmem:[%s249 + $0xbc] sm:$0xf]
    %v298 = vld [vmem:[%s249 + $0xc0] sm:$0xf]
    %v299 = vld [vmem:[%s249 + $0xc4] sm:$0xf]
    %v300 = vld [vmem:[%s249 + $0xc8] sm:$0xf]
    %v301 = vld [vmem:[%s249 + $0xcc] sm:$0xf]
    %v302 = vld [vmem:[%s249 + $0xd0] sm:$0xf]
    %v303 = vld [vmem:[%s249 + $0xd4] sm:$0xf]
    %v304 = vld [vmem:[%s249 + $0xd8] sm:$0xf]
    %v305 = vld [vmem:[%s249 + $0xdc] sm:$0xf]
    %v306 = vld [vmem:[%s249 + $0xe0] sm:$0xf]
    %v307 = vld [vmem:[%s249 + $0xe4] sm:$0xf]
    %v308 = vld [vmem:[%s249 + $0xe8] sm:$0xf]
    %v309 = vld [vmem:[%s249 + $0xec] sm:$0xf]
    %v310 = vld [vmem:[%s249 + $0xf0] sm:$0xf]
    %v311 = vld [vmem:[%s249 + $0xf4] sm:$0xf]
    %v312 = vld [vmem:[%s249 + $0xf8] sm:$0xf]
    %v313 = vld [vmem:[%s249 + $0xfc] sm:$0xf]
    %v378 = vunpack.c.l.b16 %v250
    %v379 = vunpack.c.l.b16 %v251
    %v380 = vunpack.c.l.b16 %v252
    %v381 = vunpack.c.l.b16 %v253
    %v382 = vunpack.c.l.b16 %v254
    %v383 = vunpack.c.l.b16 %v255
    %v384 = vunpack.c.l.b16 %v256
    %v385 = vunpack.c.l.b16 %v257
    %v386 = vunpack.c.l.b16 %v258
    %v387 = vunpack.c.l.b16 %v259
    %v388 = vunpack.c.l.b16 %v260
    %v389 = vunpack.c.l.b16 %v261
    %v390 = vunpack.c.l.b16 %v262
    %v391 = vunpack.c.l.b16 %v263
    %v392 = vunpack.c.l.b16 %v264
    %v393 = vunpack.c.l.b16 %v265
    %v394 = vunpack.c.l.b16 %v266
    %v395 = vunpack.c.l.b16 %v267
    %v396 = vunpack.c.l.b16 %v268
    %v397 = vunpack.c.l.b16 %v269
    %v398 = vunpack.c.l.b16 %v270
    %v399 = vunpack.c.l.b16 %v271
    %v400 = vunpack.c.l.b16 %v272
    %v401 = vunpack.c.l.b16 %v273
    %v402 = vunpack.c.l.b16 %v274
    %v403 = vunpack.c.l.b16 %v275
    %v404 = vunpack.c.l.b16 %v276
    %v405 = vunpack.c.l.b16 %v277
    %v406 = vunpack.c.l.b16 %v278
    %v407 = vunpack.c.l.b16 %v279
    %v408 = vunpack.c.l.b16 %v280
    %v409 = vunpack.c.l.b16 %v281
    %v410 = vunpack.c.l.b16 %v282
    %v411 = vunpack.c.l.b16 %v283
    %v412 = vunpack.c.l.b16 %v284
    %v413 = vunpack.c.l.b16 %v285
    %v414 = vunpack.c.l.b16 %v286
    %v415 = vunpack.c.l.b16 %v287
    %v416 = vunpack.c.l.b16 %v288
    %v417 = vunpack.c.l.b16 %v289
    %v418 = vunpack.c.l.b16 %v290
    %v419 = vunpack.c.l.b16 %v291
    %v420 = vunpack.c.l.b16 %v292
    %v421 = vunpack.c.l.b16 %v293
    %v422 = vunpack.c.l.b16 %v294
    %v423 = vunpack.c.l.b16 %v295
    %v424 = vunpack.c.l.b16 %v296
    %v425 = vunpack.c.l.b16 %v297
    %v426 = vunpack.c.l.b16 %v298
    %v427 = vunpack.c.l.b16 %v299
    %v428 = vunpack.c.l.b16 %v300
    %v429 = vunpack.c.l.b16 %v301
    %v430 = vunpack.c.l.b16 %v302
    %v431 = vunpack.c.l.b16 %v303
    %v432 = vunpack.c.l.b16 %v304
    %v433 = vunpack.c.l.b16 %v305
    %v434 = vunpack.c.l.b16 %v306
    %v435 = vunpack.c.l.b16 %v307
    %v436 = vunpack.c.l.b16 %v308
    %v437 = vunpack.c.l.b16 %v309
    %v438 = vunpack.c.l.b16 %v310
    %v439 = vunpack.c.l.b16 %v311
    %v440 = vunpack.c.l.b16 %v312
    %v441 = vunpack.c.l.b16 %v313
    %v442 = vpack.c.b16 %v379, %v378
    %v443 = vpack.c.b16 %v381, %v380
    %v444 = vpack.c.b16 %v383, %v382
    %v445 = vpack.c.b16 %v385, %v384
    %v446 = vpack.c.b16 %v387, %v386
    %v447 = vpack.c.b16 %v389, %v388
    %v448 = vpack.c.b16 %v391, %v390
    %v449 = vpack.c.b16 %v393, %v392
    %v450 = vpack.c.b16 %v395, %v394
    %v451 = vpack.c.b16 %v397, %v396
    %v452 = vpack.c.b16 %v399, %v398
    %v453 = vpack.c.b16 %v401, %v400
    %v454 = vpack.c.b16 %v403, %v402
    %v455 = vpack.c.b16 %v405, %v404
    %v456 = vpack.c.b16 %v407, %v406
    %v457 = vpack.c.b16 %v409, %v408
    %v458 = vpack.c.b16 %v411, %v410
    %v459 = vpack.c.b16 %v413, %v412
    %v460 = vpack.c.b16 %v415, %v414
    %v461 = vpack.c.b16 %v417, %v416
    %v462 = vpack.c.b16 %v419, %v418
    %v463 = vpack.c.b16 %v421, %v420
    %v464 = vpack.c.b16 %v423, %v422
    %v465 = vpack.c.b16 %v425, %v424
    %v466 = vpack.c.b16 %v427, %v426
    %v467 = vpack.c.b16 %v429, %v428
    %v468 = vpack.c.b16 %v431, %v430
    %v469 = vpack.c.b16 %v433, %v432
    %v470 = vpack.c.b16 %v435, %v434
    %v471 = vpack.c.b16 %v437, %v436
    %v472 = vpack.c.b16 %v439, %v438
    %v473 = vpack.c.b16 %v441, %v440
    %506 = vmatprep.subr.bf16.mxu0 0
    %507 = vmatpush1.bf16.msra.mxu0 %v442
    %508 = vmatprep.subr.bf16.mxu0 0
    %509 = vmatpush1.bf16.msra.mxu0 %v443
    %510 = vmatprep.subr.bf16.mxu0 0
    %511 = vmatpush1.bf16.msra.mxu0 %v444
    %512 = vmatprep.subr.bf16.mxu0 0
    %513 = vmatpush1.bf16.msra.mxu0 %v445
    %514 = vmatprep.subr.bf16.mxu0 0
    %515 = vmatpush1.bf16.msra.mxu0 %v446
    %516 = vmatprep.subr.bf16.mxu0 0
    %517 = vmatpush1.bf16.msra.mxu0 %v447
    %518 = vmatprep.subr.bf16.mxu0 0
    %519 = vmatpush1.bf16.msra.mxu0 %v448
    %520 = vmatprep.subr.bf16.mxu0 0
    %521 = vmatpush1.bf16.msra.mxu0 %v449
    %522 = vmatprep.subr.bf16.mxu0 0
    %523 = vmatpush1.bf16.msra.mxu0 %v450
    %524 = vmatprep.subr.bf16.mxu0 0
    %525 = vmatpush1.bf16.msra.mxu0 %v451
    %526 = vmatprep.subr.bf16.mxu0 0
    %527 = vmatpush1.bf16.msra.mxu0 %v452
    %528 = vmatprep.subr.bf16.mxu0 0
    %529 = vmatpush1.bf16.msra.mxu0 %v453
    %530 = vmatprep.subr.bf16.mxu0 0
    %531 = vmatpush1.bf16.msra.mxu0 %v454
    %532 = vmatprep.subr.bf16.mxu0 0
    %533 = vmatpush1.bf16.msra.mxu0 %v455
    %534 = vmatprep.subr.bf16.mxu0 0
    %535 = vmatpush1.bf16.msra.mxu0 %v456
    %536 = vmatprep.subr.bf16.mxu0 0
    %537 = vmatpush1.bf16.msra.mxu0 %v457
    %538 = vmatprep.mubr.bf16.mxu0 %v182
    %539 = vmatmul.mubr.bf16.gmra.mrb[0].mxu0 %v181
    %v540 = vpop.f32.mrb[0].mxu0
    %v541 = vadd.f32 0.0, %v540
    %v542 = vpop.f32.mrb[0].mxu0
    %v543 = vpop.f32.mrb[0].mxu0
    %v544 = vpop.f32.mrb[0].mxu0
    %545 = vdwg.mxu0
    %546 = vmatprep.subr.bf16.mxu0 0
    %547 = vmatpush1.bf16.msra.mxu0 %v458
    %548 = vmatprep.subr.bf16.mxu0 0
    %549 = vmatpush1.bf16.msra.mxu0 %v459
    %550 = vmatprep.subr.bf16.mxu0 0
    %551 = vmatpush1.bf16.msra.mxu0 %v460
    %552 = vmatprep.subr.bf16.mxu0 0
    %553 = vmatpush1.bf16.msra.mxu0 %v461
    %554 = vmatprep.subr.bf16.mxu0 0
    %555 = vmatpush1.bf16.msra.mxu0 %v462
    %556 = vmatprep.subr.bf16.mxu0 0
    %557 = vmatpush1.bf16.msra.mxu0 %v463
    %558 = vmatprep.subr.bf16.mxu0 0
    %559 = vmatpush1.bf16.msra.mxu0 %v464
    %560 = vmatprep.subr.bf16.mxu0 0
    %561 = vmatpush1.bf16.msra.mxu0 %v465
    %562 = vmatprep.subr.bf16.mxu0 0
    %563 = vmatpush1.bf16.msra.mxu0 %v466
    %564 = vmatprep.subr.bf16.mxu0 0
    %565 = vmatpush1.bf16.msra.mxu0 %v467
    %566 = vmatprep.subr.bf16.mxu0 0
    %567 = vmatpush1.bf16.msra.mxu0 %v468
    %568 = vmatprep.subr.bf16.mxu0 0
    %569 = vmatpush1.bf16.msra.mxu0 %v469
    %570 = vmatprep.subr.bf16.mxu0 0
    %571 = vmatpush1.bf16.msra.mxu0 %v470
    %572 = vmatprep.subr.bf16.mxu0 0
    %573 = vmatpush1.bf16.msra.mxu0 %v471
    %574 = vmatprep.subr.bf16.mxu0 0
    %575 = vmatpush1.bf16.msra.mxu0 %v472
    %576 = vmatprep.subr.bf16.mxu0 0
    %577 = vmatpush1.bf16.msra.mxu0 %v473
    %578 = vmatprep.mubr.bf16.mxu0 %v184
    %579 = vmatmul.mubr.bf16.gmra.mrb[0].mxu0 %v183
    %v580 = vpop.f32.mrb[0].mxu0
    %v581 = vadd.f32 %v541, %v580
    %v582 = vpop.f32.mrb[0].mxu0
    %v583 = vpop.f32.mrb[0].mxu0
    %v584 = vpop.f32.mrb[0].mxu0
    %585 = vdwg.mxu0
    %v650 = vunpack.c.l.b16 %v185
    %v651 = vunpack.c.l.b16 %v186
    %v652 = vunpack.c.l.b16 %v187
    %v653 = vunpack.c.l.b16 %v188
    %v654 = vunpack.c.l.b16 %v189
    %v655 = vunpack.c.l.b16 %v190
    %v656 = vunpack.c.l.b16 %v191
    %v657 = vunpack.c.l.b16 %v192
    %v658 = vunpack.c.l.b16 %v193
    %v659 = vunpack.c.l.b16 %v194
    %v660 = vunpack.c.l.b16 %v195
    %v661 = vunpack.c.l.b16 %v196
    %v662 = vunpack.c.l.b16 %v197
    %v663 = vunpack.c.l.b16 %v198
    %v664 = vunpack.c.l.b16 %v199
    %v665 = vunpack.c.l.b16 %v200
    %v666 = vunpack.c.l.b16 %v201
    %v667 = vunpack.c.l.b16 %v202
    %v668 = vunpack.c.l.b16 %v203
    %v669 = vunpack.c.l.b16 %v204
    %v670 = vunpack.c.l.b16 %v205
    %v671 = vunpack.c.l.b16 %v206
    %v672 = vunpack.c.l.b16 %v207
    %v673 = vunpack.c.l.b16 %v208
    %v674 = vunpack.c.l.b16 %v209
    %v675 = vunpack.c.l.b16 %v210
    %v676 = vunpack.c.l.b16 %v211
    %v677 = vunpack.c.l.b16 %v212
    %v678 = vunpack.c.l.b16 %v213
    %v679 = vunpack.c.l.b16 %v214
    %v680 = vunpack.c.l.b16 %v215
    %v681 = vunpack.c.l.b16 %v216
    %v682 = vunpack.c.l.b16 %v217
    %v683 = vunpack.c.l.b16 %v218
    %v684 = vunpack.c.l.b16 %v219
    %v685 = vunpack.c.l.b16 %v220
    %v686 = vunpack.c.l.b16 %v221
    %v687 = vunpack.c.l.b16 %v222
    %v688 = vunpack.c.l.b16 %v223
    %v689 = vunpack.c.l.b16 %v224
    %v690 = vunpack.c.l.b16 %v225
    %v691 = vunpack.c.l.b16 %v226
    %v692 = vunpack.c.l.b16 %v227
    %v693 = vunpack.c.l.b16 %v228
    %v694 = vunpack.c.l.b16 %v229
    %v695 = vunpack.c.l.b16 %v230
    %v696 = vunpack.c.l.b16 %v231
    %v697 = vunpack.c.l.b16 %v232
    %v698 = vunpack.c.l.b16 %v233
    %v699 = vunpack.c.l.b16 %v234
    %v700 = vunpack.c.l.b16 %v235
    %v701 = vunpack.c.l.b16 %v236
    %v702 = vunpack.c.l.b16 %v237
    %v703 = vunpack.c.l.b16 %v238
    %v704 = vunpack.c.l.b16 %v239
    %v705 = vunpack.c.l.b16 %v240
    %v706 = vunpack.c.l.b16 %v241
    %v707 = vunpack.c.l.b16 %v242
    %v708 = vunpack.c.l.b16 %v243
    %v709 = vunpack.c.l.b16 %v244
    %v710 = vunpack.c.l.b16 %v245
    %v711 = vunpack.c.l.b16 %v246
    %v712 = vunpack.c.l.b16 %v247
    %v713 = vunpack.c.l.b16 %v248
    %v714 = vpack.c.b16 %v651, %v650
    %v715 = vpack.c.b16 %v653, %v652
    %v716 = vpack.c.b16 %v655, %v654
    %v717 = vpack.c.b16 %v657, %v656
    %v718 = vpack.c.b16 %v659, %v658
    %v719 = vpack.c.b16 %v661, %v660
    %v720 = vpack.c.b16 %v663, %v662
    %v721 = vpack.c.b16 %v665, %v664
    %v722 = vpack.c.b16 %v667, %v666
    %v723 = vpack.c.b16 %v669, %v668
    %v724 = vpack.c.b16 %v671, %v670
    %v725 = vpack.c.b16 %v673, %v672
    %v726 = vpack.c.b16 %v675, %v674
    %v727 = vpack.c.b16 %v677, %v676
    %v728 = vpack.c.b16 %v679, %v678
    %v729 = vpack.c.b16 %v681, %v680
    %v730 = vpack.c.b16 %v683, %v682
    %v731 = vpack.c.b16 %v685, %v684
    %v732 = vpack.c.b16 %v687, %v686
    %v733 = vpack.c.b16 %v689, %v688
    %v734 = vpack.c.b16 %v691, %v690
    %v735 = vpack.c.b16 %v693, %v692
    %v736 = vpack.c.b16 %v695, %v694
    %v737 = vpack.c.b16 %v697, %v696
    %v738 = vpack.c.b16 %v699, %v698
    %v739 = vpack.c.b16 %v701, %v700
    %v740 = vpack.c.b16 %v703, %v702
    %v741 = vpack.c.b16 %v705, %v704
    %v742 = vpack.c.b16 %v707, %v706
    %v743 = vpack.c.b16 %v709, %v708
    %v744 = vpack.c.b16 %v711, %v710
    %v745 = vpack.c.b16 %v713, %v712
    %778 = vmatprep.subr.bf16.mxu0 0
    %779 = vmatpush1.bf16.msra.mxu0 %v714
    %780 = vmatprep.subr.bf16.mxu0 0
    %781 = vmatpush1.bf16.msra.mxu0 %v715
    %782 = vmatprep.subr.bf16.mxu0 0
    %783 = vmatpush1.bf16.msra.mxu0 %v716
    %784 = vmatprep.subr.bf16.mxu0 0
    %785 = vmatpush1.bf16.msra.mxu0 %v717
    %786 = vmatprep.subr.bf16.mxu0 0
    %787 = vmatpush1.bf16.msra.mxu0 %v718
    %788 = vmatprep.subr.bf16.mxu0 0
    %789 = vmatpush1.bf16.msra.mxu0 %v719
    %790 = vmatprep.subr.bf16.mxu0 0
    %791 = vmatpush1.bf16.msra.mxu0 %v720
    %792 = vmatprep.subr.bf16.mxu0 0
    %793 = vmatpush1.bf16.msra.mxu0 %v721
    %794 = vmatprep.subr.bf16.mxu0 0
    %795 = vmatpush1.bf16.msra.mxu0 %v722
    %796 = vmatprep.subr.bf16.mxu0 0
    %797 = vmatpush1.bf16.msra.mxu0 %v723
    %798 = vmatprep.subr.bf16.mxu0 0
    %799 = vmatpush1.bf16.msra.mxu0 %v724
    %800 = vmatprep.subr.bf16.mxu0 0
    %801 = vmatpush1.bf16.msra.mxu0 %v725
    %802 = vmatprep.subr.bf16.mxu0 0
    %803 = vmatpush1.bf16.msra.mxu0 %v726
    %804 = vmatprep.subr.bf16.mxu0 0
    %805 = vmatpush1.bf16.msra.mxu0 %v727
    %806 = vmatprep.subr.bf16.mxu0 0
    %807 = vmatpush1.bf16.msra.mxu0 %v728
    %808 = vmatprep.subr.bf16.mxu0 0
    %809 = vmatpush1.bf16.msra.mxu0 %v729
    %810 = vmatprep.mubr.bf16.mxu0 %v182
    %811 = vmatmul.mubr.bf16.gmra.mrb[0].mxu0 %v181
    %v812 = vpop.f32.mrb[0].mxu0
    %v813 = vadd.f32 %v581, %v812
    %v814 = vpop.f32.mrb[0].mxu0
    %v815 = vpop.f32.mrb[0].mxu0
    %v816 = vpop.f32.mrb[0].mxu0
    %817 = vdwg.mxu0
    %818 = vmatprep.subr.bf16.mxu0 0
    %819 = vmatpush1.bf16.msra.mxu0 %v730
    %820 = vmatprep.subr.bf16.mxu0 0
    %821 = vmatpush1.bf16.msra.mxu0 %v731
    %822 = vmatprep.subr.bf16.mxu0 0
    %823 = vmatpush1.bf16.msra.mxu0 %v732
    %824 = vmatprep.subr.bf16.mxu0 0
    %825 = vmatpush1.bf16.msra.mxu0 %v733
    %826 = vmatprep.subr.bf16.mxu0 0
    %827 = vmatpush1.bf16.msra.mxu0 %v734
    %828 = vmatprep.subr.bf16.mxu0 0
    %829 = vmatpush1.bf16.msra.mxu0 %v735
    %830 = vmatprep.subr.bf16.mxu0 0
    %831 = vmatpush1.bf16.msra.mxu0 %v736
    %832 = vmatprep.subr.bf16.mxu0 0
    %833 = vmatpush1.bf16.msra.mxu0 %v737
    %834 = vmatprep.subr.bf16.mxu0 0
    %835 = vmatpush1.bf16.msra.mxu0 %v738
    %836 = vmatprep.subr.bf16.mxu0 0
    %837 = vmatpush1.bf16.msra.mxu0 %v739
    %838 = vmatprep.subr.bf16.mxu0 0
    %839 = vmatpush1.bf16.msra.mxu0 %v740
    %840 = vmatprep.subr.bf16.mxu0 0
    %841 = vmatpush1.bf16.msra.mxu0 %v741
    %842 = vmatprep.subr.bf16.mxu0 0
    %843 = vmatpush1.bf16.msra.mxu0 %v742
    %844 = vmatprep.subr.bf16.mxu0 0
    %845 = vmatpush1.bf16.msra.mxu0 %v743
    %846 = vmatprep.subr.bf16.mxu0 0
    %847 = vmatpush1.bf16.msra.mxu0 %v744
    %848 = vmatprep.subr.bf16.mxu0 0
    %849 = vmatpush1.bf16.msra.mxu0 %v745
    %850 = vmatprep.mubr.bf16.mxu0 %v184
    %851 = vmatmul.mubr.bf16.gmra.mrb[0].mxu0 %v183
    %v852 = vpop.f32.mrb[0].mxu0
    %v853 = vadd.f32 %v813, %v852
    %v854 = vpop.f32.mrb[0].mxu0
    %v855 = vpop.f32.mrb[0].mxu0
    %v856 = vpop.f32.mrb[0].mxu0
    %857 = vdwg.mxu0
    %858 = vst [vmem:[#allocation7] sm:$0xf] %v853
    // Predicated region
    $region18: #{tpu_custom_call.1} parent=1 // pred_check
      _
    $region19: #{tpu_custom_call.1} parent=1 // pred_check_branch
      %860 = sbr.rel (0) target = $region21
    $region20: #{tpu_custom_call.1} parent=1 // pred_region
      %s862 = ssub.s32 64, 64
      %863 = vsyncadd [#allocation4], %s862
      %s865 = sshll.u32 [#allocation7], 4
      %s866 = int_to_ptr.vmem [resolvable:$true] %s865
      %868 = dma.vmem_to_hbm [thread:$0]  %s866, 64, %s2, [#allocation4]
    $region21: #{tpu_custom_call.1} parent=1 // pred_fallthru
      _
    // Predicated region
    $region22: #{tpu_custom_call.1} parent=1 // pred_check
      _
    $region23: #{tpu_custom_call.1} parent=1 // pred_check_branch
      %870 = sbr.rel (0) target = $region25
    $region24: #{tpu_custom_call.1} parent=1 // pred_region
      %871 = dma.done [#allocation4], 64
    $region25: #{tpu_custom_call.1} parent=1 // pred_fallthru
      _
    %872 = vsyncpa [#allocation3], 1
    %873 = vsyncpa [#allocation6], 1
    %874 = vsyncpa [#allocation4], 1

</llo_original>
